<compile_context>
chip_gen: v7x
topology: tpu7x:2x2x1
jax: 0.10.0
libtpu: 0.0.40
codegen_flags: <defaults>
</compile_context>

<pallas_src>
import jax
import jax.numpy as jnp
from jax.experimental import pallas as pl
from jax.experimental.pallas import tpu as pltpu

OBS_SIZE = 3          # observation_size
N_REF_TYPES = 6       # n_refactoring_types
HIDDEN = 32           # config PPO.num_cells
DEPTH = 2             # config PPO.depth (fixed; feature extractor has 2 layers)
ACTION_SIZE = 1       # action_size

LANES = 128           # TPU lane width; all padded compute is this wide
OBS_PAD = 16          # obs features padded 3 -> 16 (bf16 sublane-aligned K)

TB = 2048             # row tile for large (rollout-sized) batches
MIN_ROWS = 16         # minimum / bucket granularity for small batches (bf16 tile)

# Packed-parameter slab row layout (bf16).  All offsets are multiples of 16 so
# every in-kernel row slice is tile-aligned for bf16 (16,128) packing.
_W0_ROWS = (0, 16)       # [16, 128]  feature_extractor layer 0 (real [3, 32])
_W1_ROWS = (16, 144)     # [128, 128] feature_extractor layer 1 (real [32, 32])
_WH0_ROWS = (144, 272)   # [128, 128] fused head first layers  (real [32, 96])
_WH1_ROWS = (272, 400)   # [128, 128] fused head second layers (block-diag [96, 8])
_B_ROW0 = 400            # rows 400..403 = b_fe0, b_fe1, b_heads0, b_heads1
SLAB_ROWS = 416          # multiple of 16

# Column layout of the packed output / fused second-layer matmul.
_LOC_COL = N_REF_TYPES          # 6
_SCALE_COL = N_REF_TYPES + 1    # 7


def _softplus(x):
    # Matches torch.nn.Softplus (beta=1, threshold=20): linear above threshold.
    # (Differs from jax.nn.softplus only above x=20 by < 1e-9.)
    return jnp.where(x > 20.0, x, jnp.log1p(jnp.exp(jnp.minimum(x, 20.0))))


def policy_kernel(obs_ref, p_ref, out_ref):
    # obs tile is f32 in HBM (tiny stream); cast to bf16 only for the MXU.
    obs = obs_ref[...].astype(jnp.bfloat16)                     # [TB, 16]

    # Tile-aligned static views into the resident bf16 parameter slab.
    w0 = p_ref[_W0_ROWS[0]:_W0_ROWS[1], :]                      # [16, 128]
    w1 = p_ref[_W1_ROWS[0]:_W1_ROWS[1], :]                      # [128, 128]
    wh0 = p_ref[_WH0_ROWS[0]:_WH0_ROWS[1], :]                   # [128, 128]
    wh1 = p_ref[_WH1_ROWS[0]:_WH1_ROWS[1], :]                   # [128, 128]
    # Bias rows loaded directly from the ref (no block load + value-slice).
    b0 = p_ref[_B_ROW0 + 0:_B_ROW0 + 1, :].astype(jnp.float32)  # [1, 128]
    b1 = p_ref[_B_ROW0 + 1:_B_ROW0 + 2, :].astype(jnp.float32)
    bh0 = p_ref[_B_ROW0 + 2:_B_ROW0 + 3, :].astype(jnp.float32)
    bh1 = p_ref[_B_ROW0 + 3:_B_ROW0 + 4, :].astype(jnp.float32)

    # ---- feature_extractor: depth x (Linear + Tanh), 128-lane padded --------
    # bf16 matmul operands, f32 accumulation, f32 activations (v5e has no bf16
    # VPU/EUP so tanh/softplus stay f32 on all generations).
    h = jnp.tanh(jnp.dot(obs, w0, preferred_element_type=jnp.float32) + b0)
    h = jnp.tanh(jnp.dot(h.astype(jnp.bfloat16), w1,
                         preferred_element_type=jnp.float32) + b1)

    # ---- three heads fused into two matmuls ---------------------------------
    # hh cols: 0:32 = refactoring_policy hidden, 32:64 = action_loc hidden,
    #          64:96 = action_scale hidden, 96:128 = 0
    hh = jnp.tanh(jnp.dot(h.astype(jnp.bfloat16), wh0,
                          preferred_element_type=jnp.float32) + bh0)
    # out cols: 0:6 = logits, 6 = loc, 7 = scale pre-softplus, 8:128 = 0
    out = jnp.dot(hh.astype(jnp.bfloat16), wh1,
                  preferred_element_type=jnp.float32) + bh1     # [TB, 128] f32

    # Softplus only on the scale column (the +1e-6 is added in f32 in the
    # wrapper so it isn't lost to the bf16 output cast); padded columns stay 0.
    col = jax.lax.broadcasted_iota(jnp.int32, out.shape, 1)
    out = jnp.where(col == _SCALE_COL, _softplus(out), out)

    out_ref[...] = out.astype(out_ref.dtype)   # single full-lane bf16 store


def init_params(key):
    """Deterministic PyTorch-style (uniform +-1/sqrt(fan_in)) init.

    Weights are stored as [in_features, out_features] (transpose of nn.Linear).
    """
    def linear(key, fan_in, fan_out):
        k_w, k_b = jax.random.split(key)
        bound = 1.0 / jnp.sqrt(fan_in)
        w = jax.random.uniform(k_w, (fan_in, fan_out), jnp.float32, -bound, bound)
        b = jax.random.uniform(k_b, (fan_out,), jnp.float32, -bound, bound)
        return w, b

    keys = jax.random.split(key, 8)
    return {
        "fe0": linear(keys[0], OBS_SIZE, HIDDEN),
        "fe1": linear(keys[1], HIDDEN, HIDDEN),
        "rp0": linear(keys[2], HIDDEN, HIDDEN),
        "rp1": linear(keys[3], HIDDEN, N_REF_TYPES),
        "lc0": linear(keys[4], HIDDEN, HIDDEN),
        "lc1": linear(keys[5], HIDDEN, ACTION_SIZE),
        "sc0": linear(keys[6], HIDDEN, HIDDEN),
        "sc1": linear(keys[7], HIDDEN, ACTION_SIZE),
    }


def pack_params(params):
    """Pack all 16 weight/bias tensors into one lane-dense [416, 128] bf16 slab.

    Every lane outside the real blocks is exactly zero; the kernel's 128-lane
    padded math is only correct because of that (tanh(0)=0 preserves it).
    """
    slab = jnp.zeros((SLAB_ROWS, LANES), jnp.float32)

    w_fe0, b_fe0 = params["fe0"]
    w_fe1, b_fe1 = params["fe1"]
    w_rp0, b_rp0 = params["rp0"]
    w_rp1, b_rp1 = params["rp1"]
    w_lc0, b_lc0 = params["lc0"]
    w_lc1, b_lc1 = params["lc1"]
    w_sc0, b_sc0 = params["sc0"]
    w_sc1, b_sc1 = params["sc1"]

    # feature_extractor layer 0: real block [0:3, 0:32] inside [16, 128]
    slab = slab.at[0:OBS_SIZE, 0:HIDDEN].set(w_fe0)
    # feature_extractor layer 1: real block [0:32, 0:32] inside [128, 128]
    r = _W1_ROWS[0]
    slab = slab.at[r:r + HIDDEN, 0:HIDDEN].set(w_fe1)
    # fused head first layers: cols [0:32]=rp0, [32:64]=lc0, [64:96]=sc0
    r = _WH0_ROWS[0]
    slab = slab.at[r:r + HIDDEN, 0:HIDDEN].set(w_rp0)
    slab = slab.at[r:r + HIDDEN, HIDDEN:2 * HIDDEN].set(w_lc0)
    slab = slab.at[r:r + HIDDEN, 2 * HIDDEN:3 * HIDDEN].set(w_sc0)
    # fused head second layers: block-diagonal [96, 8]
    r = _WH1_ROWS[0]
    slab = slab.at[r:r + HIDDEN, 0:N_REF_TYPES].set(w_rp1)
    slab = slab.at[r + HIDDEN:r + 2 * HIDDEN, _LOC_COL:_LOC_COL + 1].set(w_lc1)
    slab = slab.at[r + 2 * HIDDEN:r + 3 * HIDDEN, _SCALE_COL:_SCALE_COL + 1].set(w_sc1)
    # biases
    slab = slab.at[_B_ROW0 + 0, 0:HIDDEN].set(b_fe0)
    slab = slab.at[_B_ROW0 + 1, 0:HIDDEN].set(b_fe1)
    slab = slab.at[_B_ROW0 + 2, 0:HIDDEN].set(b_rp0)
    slab = slab.at[_B_ROW0 + 2, HIDDEN:2 * HIDDEN].set(b_lc0)
    slab = slab.at[_B_ROW0 + 2, 2 * HIDDEN:3 * HIDDEN].set(b_sc0)
    slab = slab.at[_B_ROW0 + 3, 0:N_REF_TYPES].set(b_rp1)
    slab = slab.at[_B_ROW0 + 3, _LOC_COL].set(b_lc1[0])
    slab = slab.at[_B_ROW0 + 3, _SCALE_COL].set(b_sc1[0])
    return slab.astype(jnp.bfloat16)


def refactoring_policy_forward(refactoring, refactoring_type, success, packed_params):
    # Glue: replicate the .float().unsqueeze(-1) + cat(dim=-1) preamble.
    def to_2d(t):
        t = t.astype(jnp.float32)
        return t[:, None] if t.ndim == 1 else t

    obs = jnp.concatenate(
        [to_2d(refactoring), to_2d(refactoring_type), to_2d(success)], axis=-1)
    batch = obs.shape[0]

    # Bucket/pad the batch: small batches pad to a multiple of 16 (single grid
    # step); rollout-sized batches pad to a multiple of TB and stream TB-row
    # tiles. Padded rows are sliced off after the kernel.
    if batch <= TB:
        rows = max(MIN_ROWS, ((batch + MIN_ROWS - 1) // MIN_ROWS) * MIN_ROWS)
        tile = rows
    else:
        rows = ((batch + TB - 1) // TB) * TB
        tile = TB

    # Pad feature dim 3 -> 16 (tile-aligned K) and batch dim -> rows.
    obs = jnp.pad(obs, ((0, rows - batch), (0, OBS_PAD - OBS_SIZE)))

    # Per-tile VMEM (worst case, TB=2048): obs 128 KiB x2 buffers, bf16 out
    # 512 KiB x2, bf16 params slab ~104 KiB resident -> well under even v7x's
    # 32 MiB scoped default, so no vmem_limit_bytes override is needed.
    packed = pl.pallas_call(
        policy_kernel,
        out_shape=jax.ShapeDtypeStruct((rows, LANES), jnp.bfloat16),
        grid=(rows // tile,),
        in_specs=[
            pl.BlockSpec((tile, OBS_PAD), lambda i: (i, 0)),
            # Constant index_map: the params slab is DMA'd once and stays
            # resident across all batch tiles.
            pl.BlockSpec((SLAB_ROWS, LANES), lambda i: (0, 0)),
        ],
        out_specs=pl.BlockSpec((tile, LANES), lambda i: (i, 0)),
        compiler_params=pltpu.CompilerParams(
            dimension_semantics=("parallel",)),
    )(obs, packed_params)

    packed = packed[:batch].astype(jnp.float32)
    logits = packed[:, 0:N_REF_TYPES]
    loc = packed[:, _LOC_COL:_LOC_COL + 1]
    scale = packed[:, _SCALE_COL:_SCALE_COL + 1] + 1e-6   # +1e-6 in f32 here
    return logits, loc, scale


def _ref_forward(params, refactoring, refactoring_type, success):
    """Plain-JAX f32 reference of the PyTorch forward (correctness check)."""
    def to_2d(t):
        t = t.astype(jnp.float32)
        return t[:, None] if t.ndim == 1 else t

    obs = jnp.concatenate(
        [to_2d(refactoring), to_2d(refactoring_type), to_2d(success)], axis=-1)
    h = jnp.tanh(obs @ params["fe0"][0] + params["fe0"][1])
    h = jnp.tanh(h @ params["fe1"][0] + params["fe1"][1])
    r = jnp.tanh(h @ params["rp0"][0] + params["rp0"][1])
    logits = r @ params["rp1"][0] + params["rp1"][1]
    l = jnp.tanh(h @ params["lc0"][0] + params["lc0"][1])
    loc = l @ params["lc1"][0] + params["lc1"][1]
    s = jnp.tanh(h @ params["sc0"][0] + params["sc0"][1])
    scale = jax.nn.softplus(s @ params["sc1"][0] + params["sc1"][1]) + 1e-6
    return logits, loc, scale


def _check(params, packed_params, key, batch, atol, rtol):
    k_r, k_t, k_s = jax.random.split(key, 3)
    refactoring = jax.random.normal(k_r, (batch,), jnp.float32)
    refactoring_type = jax.random.randint(
        k_t, (batch,), 0, N_REF_TYPES).astype(jnp.int32)
    success = jax.random.bernoulli(k_s, 0.5, (batch,)).astype(jnp.int32)

    logits, loc, scale = jax.block_until_ready(
        refactoring_policy_forward(refactoring, refactoring_type, success,
                                   packed_params))
    ref_logits, ref_loc, ref_scale = _ref_forward(
        params, refactoring, refactoring_type, success)

    assert logits.shape == (batch, N_REF_TYPES)
    assert loc.shape == (batch, ACTION_SIZE)
    assert scale.shape == (batch, ACTION_SIZE)
    assert bool(jnp.all(scale > 0.0))
    # bf16 matmul operands + bf16 packed output => loosened tolerances.
    assert bool(jnp.allclose(logits, ref_logits, atol=atol, rtol=rtol))
    assert bool(jnp.allclose(loc, ref_loc, atol=atol, rtol=rtol))
    assert bool(jnp.allclose(scale, ref_scale, atol=atol, rtol=rtol))


if __name__ == "__main__":
    key = jax.random.PRNGKey(0)
    k_p, k_small, k_big = jax.random.split(key, 3)

    params = init_params(k_p)
    packed_params = pack_params(params)

    # Small batch: single grid step (pads 8 -> 16 rows).
    _check(params, packed_params, k_small, batch=8, atol=3e-2, rtol=3e-2)
    # Rollout-sized batch: exercises the TB=2048 row-tiled grid (3 tiles) with
    # the resident params slab and the parallel batch axis.
    _check(params, packed_params, k_big, batch=4100, atol=3e-2, rtol=3e-2)

    print("KERNEL_OK")
</pallas_src>

<mosaic_0001>
module attributes {stable_mosaic.version = 11 : i64} {
  func.func @policy_kernel(%arg0: i32, %arg1: memref<16x16xf32, #tpu.memory_space<vmem>>, %arg2: memref<416x128xbf16, #tpu.memory_space<vmem>>, %arg3: memref<16x128xbf16, #tpu.memory_space<vmem>>) attributes {dimension_semantics = [#tpu.dimension_semantics<parallel>], iteration_bounds = array<i64: 1>, scalar_prefetch = 0 : i64, scratch_operands = 0 : i64, tpu.core_type = #tpu.core_type<tc>, window_params = [{transform_indices = @transform_0, window_bounds = array<i64: 16, 16>}, {pipeline_mode = #tpu.pipeline_mode<synchronous>, transform_indices = @transform_1, window_bounds = array<i64: 416, 128>}, {transform_indices = @transform_2, window_bounds = array<i64: 16, 128>}]} {
    %c0 = arith.constant 0 : index
    %c0_0 = arith.constant 0 : index
    %0 = vector.load %arg1[%c0, %c0_0] : memref<16x16xf32, #tpu.memory_space<vmem>>, vector<16x16xf32>
    %1 = arith.truncf %0 : vector<16x16xf32> to vector<16x16xbf16>
    %c0_1 = arith.constant 0 : index
    %c0_2 = arith.constant 0 : index
    %2 = vector.load %arg2[%c0_1, %c0_2] : memref<416x128xbf16, #tpu.memory_space<vmem>>, vector<16x128xbf16>
    %c16 = arith.constant 16 : index
    %c0_3 = arith.constant 0 : index
    %3 = vector.load %arg2[%c16, %c0_3] : memref<416x128xbf16, #tpu.memory_space<vmem>>, vector<128x128xbf16>
    %c144 = arith.constant 144 : index
    %c0_4 = arith.constant 0 : index
    %4 = vector.load %arg2[%c144, %c0_4] : memref<416x128xbf16, #tpu.memory_space<vmem>>, vector<128x128xbf16>
    %c272 = arith.constant 272 : index
    %c0_5 = arith.constant 0 : index
    %5 = vector.load %arg2[%c272, %c0_5] : memref<416x128xbf16, #tpu.memory_space<vmem>>, vector<128x128xbf16>
    %c400 = arith.constant 400 : index
    %c0_6 = arith.constant 0 : index
    %6 = vector.load %arg2[%c400, %c0_6] : memref<416x128xbf16, #tpu.memory_space<vmem>>, vector<1x128xbf16>
    %7 = arith.extf %6 : vector<1x128xbf16> to vector<1x128xf32>
    %c401 = arith.constant 401 : index
    %c0_7 = arith.constant 0 : index
    %8 = vector.load %arg2[%c401, %c0_7] : memref<416x128xbf16, #tpu.memory_space<vmem>>, vector<1x128xbf16>
    %9 = arith.extf %8 : vector<1x128xbf16> to vector<1x128xf32>
    %c402 = arith.constant 402 : index
    %c0_8 = arith.constant 0 : index
    %10 = vector.load %arg2[%c402, %c0_8] : memref<416x128xbf16, #tpu.memory_space<vmem>>, vector<1x128xbf16>
    %11 = arith.extf %10 : vector<1x128xbf16> to vector<1x128xf32>
    %c403 = arith.constant 403 : index
    %c0_9 = arith.constant 0 : index
    %12 = vector.load %arg2[%c403, %c0_9] : memref<416x128xbf16, #tpu.memory_space<vmem>>, vector<1x128xbf16>
    %13 = arith.extf %12 : vector<1x128xbf16> to vector<1x128xf32>
    %cst = arith.constant dense<0.000000e+00> : vector<16x128xf32>
    %14 = tpu.matmul %1, %2, %cst {dimension_numbers = #tpu.dot_dimension_numbers<[1], [0], [0], [1], [0, 0, 1, 1], [], []>} : vector<16x16xbf16>, vector<16x128xbf16>, vector<16x128xf32> -> vector<16x128xf32>
    %15 = vector.broadcast %7 : vector<1x128xf32> to vector<16x128xf32>
    %16 = arith.addf %14, %15 : vector<16x128xf32>
    %17 = math.tanh %16 : vector<16x128xf32>
    %18 = arith.truncf %17 : vector<16x128xf32> to vector<16x128xbf16>
    %cst_10 = arith.constant dense<0.000000e+00> : vector<16x128xf32>
    %19 = tpu.matmul %18, %3, %cst_10 {dimension_numbers = #tpu.dot_dimension_numbers<[1], [0], [0], [1], [0, 0, 1, 1], [], []>} : vector<16x128xbf16>, vector<128x128xbf16>, vector<16x128xf32> -> vector<16x128xf32>
    %20 = vector.broadcast %9 : vector<1x128xf32> to vector<16x128xf32>
    %21 = arith.addf %19, %20 : vector<16x128xf32>
    %22 = math.tanh %21 : vector<16x128xf32>
    %23 = arith.truncf %22 : vector<16x128xf32> to vector<16x128xbf16>
    %cst_11 = arith.constant dense<0.000000e+00> : vector<16x128xf32>
    %24 = tpu.matmul %23, %4, %cst_11 {dimension_numbers = #tpu.dot_dimension_numbers<[1], [0], [0], [1], [0, 0, 1, 1], [], []>} : vector<16x128xbf16>, vector<128x128xbf16>, vector<16x128xf32> -> vector<16x128xf32>
    %25 = vector.broadcast %11 : vector<1x128xf32> to vector<16x128xf32>
    %26 = arith.addf %24, %25 : vector<16x128xf32>
    %27 = math.tanh %26 : vector<16x128xf32>
    %28 = arith.truncf %27 : vector<16x128xf32> to vector<16x128xbf16>
    %cst_12 = arith.constant dense<0.000000e+00> : vector<16x128xf32>
    %29 = tpu.matmul %28, %5, %cst_12 {dimension_numbers = #tpu.dot_dimension_numbers<[1], [0], [0], [1], [0, 0, 1, 1], [], []>} : vector<16x128xbf16>, vector<128x128xbf16>, vector<16x128xf32> -> vector<16x128xf32>
    %30 = vector.broadcast %13 : vector<1x128xf32> to vector<16x128xf32>
    %31 = arith.addf %29, %30 : vector<16x128xf32>
    %32 = tpu.iota {dimensions = array<i32: 1>} : vector<16x128xi32>
    %c7_i32 = arith.constant 7 : i32
    %33 = vector.broadcast %c7_i32 : i32 to vector<16x128xi32>
    %34 = arith.cmpi eq, %32, %33 : vector<16x128xi32>
    %cst_13 = arith.constant 2.000000e+01 : f32
    %35 = vector.broadcast %cst_13 : f32 to vector<16x128xf32>
    %36 = arith.cmpf ogt, %31, %35 : vector<16x128xf32>
    %cst_14 = arith.constant 2.000000e+01 : f32
    %37 = vector.broadcast %cst_14 : f32 to vector<16x128xf32>
    %38 = arith.minimumf %31, %37 : vector<16x128xf32>
    %39 = math.exp %38 : vector<16x128xf32>
    %40 = math.log1p %39 : vector<16x128xf32>
    %41 = arith.select %36, %31, %40 : vector<16x128xi1>, vector<16x128xf32>
    %42 = arith.select %34, %41, %31 : vector<16x128xi1>, vector<16x128xf32>
    %43 = arith.truncf %42 : vector<16x128xf32> to vector<16x128xbf16>
    %c0_15 = arith.constant 0 : index
    %c0_16 = arith.constant 0 : index
    %44 = vector.load %arg3[%c0_15, %c0_16] : memref<16x128xbf16, #tpu.memory_space<vmem>>, vector<16x128xbf16>
    tpu.vector_store %arg3[%c0_15, %c0_16], %43 {strides = array<i32>} : memref<16x128xbf16, #tpu.memory_space<vmem>>, vector<16x128xbf16>,
    return
  }
  func.func @transform_0(%arg0: i32) -> (i32, i32) {
    %c0_i32 = arith.constant 0 : i32
    %c0_i32_0 = arith.constant 0 : i32
    return %arg0, %c0_i32 : i32, i32
  }
  func.func @transform_1(%arg0: i32) -> (i32, i32) {
    %c0_i32 = arith.constant 0 : i32
    %c0_i32_0 = arith.constant 0 : i32
    %c0_i32_1 = arith.constant 0 : i32
    return %c0_i32, %c0_i32_0 : i32, i32
  }
  func.func @transform_2(%arg0: i32) -> (i32, i32) {
    %c0_i32 = arith.constant 0 : i32
    %c0_i32_0 = arith.constant 0 : i32
    return %arg0, %c0_i32 : i32, i32
  }
}

</mosaic_0001>

<llo_original>
// kernel: tpu_custom_call.1
$region0: #{tpu_custom_call.1}
  #allocation0 [shape = 'u32[]', space=smem, size = 0x4, offset = 0x4, fixed_abs, tag = 'smem constant byte address 0x4 - core index']
  #allocation1 [shape = 'u32[144,128]{1,0:T(1,128)}', space=vmem, size = 0x12000, scoped, tag = 'internal scratch']
  %s0 = inlined_call_operand.hbm [shape: f32[16,16], index: 0, kind: input, shape index: {}]
  %s1 = inlined_call_operand.hbm [shape: bf16[416,128], index: 1, kind: input, shape index: {}]
  %s2 = inlined_call_operand.hbm [shape: bf16[16,128], index: 2, kind: output, shape index: {}]
  %s3 = sld [smem:[#allocation0]]
  $region26: #{tpu_custom_call.1} parent=0
    _
  %s5 = ssub.s32 1, %s3
  %s6 = scalar_select 0, %s5, %s3
  $region1: #{tpu_custom_call.1} parent=0
    #allocation2 [shape = 'u8[8192]{0}', space=vmem, size = 0x2000, scoped, tag = 'input window, operand 0, single buffered']
    #allocation3 [shape = 's32[1]{0}', space=sflag, size = 0x4, scoped, tag = 'scoped memory for tpu_custom_call.1']
    #allocation4 [shape = 's32[1]{0}', space=sflag, size = 0x4, scoped, tag = 'scoped memory for tpu_custom_call.1']
    #allocation5 [shape = 'u8[106496]{0}', space=vmem, size = 0x1a000, scoped, tag = 'input window, operand 1, single buffered']
    #allocation6 [shape = 's32[1]{0}', space=sflag, size = 0x4, scoped, tag = 'scoped memory for tpu_custom_call.1']
    #allocation7 [shape = 'u8[4096]{0}', space=vmem, size = 0x1000, scoped, tag = 'output window, operand 0, single buffered']
    %7 = vsyncpa [#allocation3], 0
    %8 = vsyncpa [#allocation6], 0
    %9 = vsyncpa [#allocation4], 0
    // Predicated region
    $region2: #{tpu_custom_call.1} parent=1 // pred_check
      _
    $region3: #{tpu_custom_call.1} parent=1 // pred_check_branch
      %11 = sbr.rel (0) target = $region5
    $region4: #{tpu_custom_call.1} parent=1 // pred_region
      %s13 = ssub.s32 256, 256
      %14 = vsyncadd [#allocation3], %s13
      %s15 = sshll.u32 [#allocation2], 4
      %s16 = int_to_ptr.vmem [resolvable:$true] %s15
      %21 = dma.hbm_to_vmem [thread:$0]  %s0, 256, %s16, [#allocation3], 128, 128, 8
    $region5: #{tpu_custom_call.1} parent=1 // pred_fallthru
      _
    // Predicated region
    $region6: #{tpu_custom_call.1} parent=1 // pred_check
      _
    $region7: #{tpu_custom_call.1} parent=1 // pred_check_branch
      %23 = sbr.rel (0) target = $region9
    $region8: #{tpu_custom_call.1} parent=1 // pred_region
      %s25 = ssub.s32 3328, 3328
      %26 = vsyncadd [#allocation6], %s25
      %s27 = sshll.u32 [#allocation5], 4
      %s28 = int_to_ptr.vmem [resolvable:$true] %s27
      %33 = dma.hbm_to_vmem [thread:$0]  %s1, 3328, %s28, [#allocation6], 64, 64, 4
    $region9: #{tpu_custom_call.1} parent=1 // pred_fallthru
      _
    // Predicated region
    $region10: #{tpu_custom_call.1} parent=1 // pred_check
      _
    $region11: #{tpu_custom_call.1} parent=1 // pred_check_branch
      %35 = sbr.rel (0) target = $region13
    $region12: #{tpu_custom_call.1} parent=1 // pred_region
      %36 = dma.done [#allocation3], 256
    $region13: #{tpu_custom_call.1} parent=1 // pred_fallthru
      _
    // Predicated region
    $region14: #{tpu_custom_call.1} parent=1 // pred_check
      _
    $region15: #{tpu_custom_call.1} parent=1 // pred_check_branch
      %38 = sbr.rel (0) target = $region17
    $region16: #{tpu_custom_call.1} parent=1 // pred_region
      %39 = dma.done [#allocation6], 3328
    $region17: #{tpu_custom_call.1} parent=1 // pred_fallthru
      _
    %v41 = vld [vmem:[#allocation2] sm:$0xff]
    %v42 = vld [vmem:[#allocation2 + $0x8] sm:$0xff]
    %v43 = vpack.c.bf16 %v42, %v41
    %v44 = vld [vmem:[#allocation5] sm:$0xf]
    %v45 = vld [vmem:[#allocation5 + $0x4] sm:$0xf]
    %v46 = vld [vmem:[#allocation5 + $0x8] sm:$0xf]
    %v47 = vld [vmem:[#allocation5 + $0xc] sm:$0xf]
    %v48 = vld [vmem:[#allocation5 + $0x10] sm:$0xf]
    %v49 = vld [vmem:[#allocation5 + $0x14] sm:$0xf]
    %v50 = vld [vmem:[#allocation5 + $0x18] sm:$0xf]
    %v51 = vld [vmem:[#allocation5 + $0x1c] sm:$0xf]
    %v52 = vld [vmem:[#allocation5 + $0x20] sm:$0xf]
    %v53 = vld [vmem:[#allocation5 + $0x24] sm:$0xf]
    %v54 = vld [vmem:[#allocation5 + $0x28] sm:$0xf]
    %v55 = vld [vmem:[#allocation5 + $0x2c] sm:$0xf]
    %v56 = vld [vmem:[#allocation5 + $0x30] sm:$0xf]
    %v57 = vld [vmem:[#allocation5 + $0x34] sm:$0xf]
    %v58 = vld [vmem:[#allocation5 + $0x38] sm:$0xf]
    %v59 = vld [vmem:[#allocation5 + $0x3c] sm:$0xf]
    %v60 = vld [vmem:[#allocation5 + $0x40] sm:$0xf]
    %v61 = vld [vmem:[#allocation5 + $0x44] sm:$0xf]
    %v62 = vld [vmem:[#allocation5 + $0x48] sm:$0xf]
    %v63 = vld [vmem:[#allocation5 + $0x4c] sm:$0xf]
    %v64 = vld [vmem:[#allocation5 + $0x50] sm:$0xf]
    %v65 = vld [vmem:[#allocation5 + $0x54] sm:$0xf]
    %v66 = vld [vmem:[#allocation5 + $0x58] sm:$0xf]
    %v67 = vld [vmem:[#allocation5 + $0x5c] sm:$0xf]
    %v68 = vld [vmem:[#allocation5 + $0x60] sm:$0xf]
    %v69 = vld [vmem:[#allocation5 + $0x64] sm:$0xf]
    %v70 = vld [vmem:[#allocation5 + $0x68] sm:$0xf]
    %v71 = vld [vmem:[#allocation5 + $0x6c] sm:$0xf]
    %v72 = vld [vmem:[#allocation5 + $0x70] sm:$0xf]
    %v73 = vld [vmem:[#allocation5 + $0x74] sm:$0xf]
    %v74 = vld [vmem:[#allocation5 + $0x78] sm:$0xf]
    %v75 = vld [vmem:[#allocation5 + $0x7c] sm:$0xf]
    %v76 = vld [vmem:[#allocation5 + $0x80] sm:$0xf]
    %v77 = vld [vmem:[#allocation5 + $0x84] sm:$0xf]
    %v78 = vld [vmem:[#allocation5 + $0x88] sm:$0xf]
    %v79 = vld [vmem:[#allocation5 + $0x8c] sm:$0xf]
    %v80 = vld [vmem:[#allocation5 + $0x90] sm:$0xf]
    %v81 = vld [vmem:[#allocation5 + $0x94] sm:$0xf]
    %v82 = vld [vmem:[#allocation5 + $0x98] sm:$0xf]
    %v83 = vld [vmem:[#allocation5 + $0x9c] sm:$0xf]
    %v84 = vld [vmem:[#allocation5 + $0xa0] sm:$0xf]
    %v85 = vld [vmem:[#allocation5 + $0xa4] sm:$0xf]
    %v86 = vld [vmem:[#allocation5 + $0xa8] sm:$0xf]
    %v87 = vld [vmem:[#allocation5 + $0xac] sm:$0xf]
    %v88 = vld [vmem:[#allocation5 + $0xb0] sm:$0xf]
    %v89 = vld [vmem:[#allocation5 + $0xb4] sm:$0xf]
    %v90 = vld [vmem:[#allocation5 + $0xb8] sm:$0xf]
    %v91 = vld [vmem:[#allocation5 + $0xbc] sm:$0xf]
    %v92 = vld [vmem:[#allocation5 + $0xc0] sm:$0xf]
    %v93 = vld [vmem:[#allocation5 + $0xc4] sm:$0xf]
    %v94 = vld [vmem:[#allocation5 + $0xc8] sm:$0x1]
    %v95 = vunpack.c.l.bf16 %v94
    %v96 = vld [vmem:[#allocation5 + $0xc8] sm:$0x2]
    %v97 = vunpack.c.l.bf16 %v96
    %v98 = vlaneseq
    %v99 = vshrl.u32 %v98, 7
    %v100 = vsub.s32 0, %v99
    %v101 = vrot.slane %v95, %v100
    %v104 = vunpack.c.l.b16 %v44
    %v105 = vunpack.c.l.b16 %v45
    %v106 = vpack.c.b16 %v105, %v104
    %vm108 = vcmask 130048
    %v110 = vsel %vm108, %v43, 0
    %112 = vmatprep.subr.bf16.mxu0 0
    %113 = vmatpush1.bf16.msra.mxu0 %v106
    %114 = vmatprep.subr.bf16.mxu0 0
    %115 = vmatpush1.bf16.msra.mxu0 0
    %116 = vmatprep.subr.bf16.mxu0 0
    %117 = vmatpush1.bf16.msra.mxu0 0
    %118 = vmatprep.subr.bf16.mxu0 0
    %119 = vmatpush1.bf16.msra.mxu0 0
    %120 = vmatprep.subr.bf16.mxu0 0
    %121 = vmatpush1.bf16.msra.mxu0 0
    %122 = vmatprep.subr.bf16.mxu0 0
    %123 = vmatpush1.bf16.msra.mxu0 0
    %124 = vmatprep.subr.bf16.mxu0 0
    %125 = vmatpush1.bf16.msra.mxu0 0
    %126 = vmatprep.subr.bf16.mxu0 0
    %127 = vmatpush1.bf16.msra.mxu0 0
    %128 = vmatprep.subr.bf16.mxu0 0
    %129 = vmatpush1.bf16.msra.mxu0 0
    %130 = vmatprep.subr.bf16.mxu0 0
    %131 = vmatpush1.bf16.msra.mxu0 0
    %132 = vmatprep.subr.bf16.mxu0 0
    %133 = vmatpush1.bf16.msra.mxu0 0
    %134 = vmatprep.subr.bf16.mxu0 0
    %135 = vmatpush1.bf16.msra.mxu0 0
    %136 = vmatprep.subr.bf16.mxu0 0
    %137 = vmatpush1.bf16.msra.mxu0 0
    %138 = vmatprep.subr.bf16.mxu0 0
    %139 = vmatpush1.bf16.msra.mxu0 0
    %140 = vmatprep.subr.bf16.mxu0 0
    %141 = vmatpush1.bf16.msra.mxu0 0
    %142 = vmatprep.subr.bf16.mxu0 0
    %143 = vmatpush1.bf16.msra.mxu0 0
    %144 = vmatprep.mubr.bf16.mxu0 0
    %145 = vmatmul.mubr.bf16.gmra.mrb[0].mxu0 %v110
    %v146 = vpop.f32.mrb[0].mxu0
    %v147 = vadd.f32 %v101, %v146
    %v148 = vpop.f32.mrb[0].mxu0
    %v149 = vpop.f32.mrb[0].mxu0
    %v150 = vadd.f32 %v101, %v149
    %v151 = vpop.f32.mrb[0].mxu0
    %152 = vdwg.mxu0
    %v153 = vtanh.pop %v147
    %v154 = vtanh.pop %v150
    %v155 = vpack.c.bf16 %v154, %v153
    %v156 = vlaneseq
    %v157 = vshrl.u32 %v156, 7
    %v158 = vsub.s32 1, %v157
    %v159 = vrot.slane %v95, %v158
    %v176 = vunpack.c.l.b16 %v46
    %v177 = vunpack.c.l.b16 %v47
    %v178 = vunpack.c.l.b16 %v48
    %v179 = vunpack.c.l.b16 %v49
    %v180 = vunpack.c.l.b16 %v50
    %v181 = vunpack.c.l.b16 %v51
    %v182 = vunpack.c.l.b16 %v52
    %v183 = vunpack.c.l.b16 %v53
    %v184 = vunpack.c.l.b16 %v54
    %v185 = vunpack.c.l.b16 %v55
    %v186 = vunpack.c.l.b16 %v56
    %v187 = vunpack.c.l.b16 %v57
    %v188 = vunpack.c.l.b16 %v58
    %v189 = vunpack.c.l.b16 %v59
    %v190 = vunpack.c.l.b16 %v60
    %v191 = vunpack.c.l.b16 %v61
    %v192 = vpack.c.b16 %v177, %v176
    %v193 = vpack.c.b16 %v179, %v178
    %v194 = vpack.c.b16 %v181, %v180
    %v195 = vpack.c.b16 %v183, %v182
    %v196 = vpack.c.b16 %v185, %v184
    %v197 = vpack.c.b16 %v187, %v186
    %v198 = vpack.c.b16 %v189, %v188
    %v199 = vpack.c.b16 %v191, %v190
    %208 = vmatprep.subr.bf16.mxu0 0
    %209 = vmatpush1.bf16.msra.mxu0 %v192
    %210 = vmatprep.subr.bf16.mxu0 0
    %211 = vmatpush1.bf16.msra.mxu0 %v193
    %212 = vmatprep.subr.bf16.mxu0 0
    %213 = vmatpush1.bf16.msra.mxu0 %v194
    %214 = vmatprep.subr.bf16.mxu0 0
    %215 = vmatpush1.bf16.msra.mxu0 %v195
    %216 = vmatprep.subr.bf16.mxu0 0
    %217 = vmatpush1.bf16.msra.mxu0 %v196
    %218 = vmatprep.subr.bf16.mxu0 0
    %219 = vmatpush1.bf16.msra.mxu0 %v197
    %220 = vmatprep.subr.bf16.mxu0 0
    %221 = vmatpush1.bf16.msra.mxu0 %v198
    %222 = vmatprep.subr.bf16.mxu0 0
    %223 = vmatpush1.bf16.msra.mxu0 %v199
    %224 = vmatprep.subr.bf16.mxu0 0
    %225 = vmatpush1.bf16.msra.mxu0 0
    %226 = vmatprep.subr.bf16.mxu0 0
    %227 = vmatpush1.bf16.msra.mxu0 0
    %228 = vmatprep.subr.bf16.mxu0 0
    %229 = vmatpush1.bf16.msra.mxu0 0
    %230 = vmatprep.subr.bf16.mxu0 0
    %231 = vmatpush1.bf16.msra.mxu0 0
    %232 = vmatprep.subr.bf16.mxu0 0
    %233 = vmatpush1.bf16.msra.mxu0 0
    %234 = vmatprep.subr.bf16.mxu0 0
    %235 = vmatpush1.bf16.msra.mxu0 0
    %236 = vmatprep.subr.bf16.mxu0 0
    %237 = vmatpush1.bf16.msra.mxu0 0
    %238 = vmatprep.subr.bf16.mxu0 0
    %239 = vmatpush1.bf16.msra.mxu0 0
    %240 = vmatprep.mubr.bf16.mxu0 0
    %241 = vmatmul.mubr.bf16.gmra.mrb[0].mxu0 %v155
    %v242 = vpop.f32.mrb[0].mxu0
    %v243 = vadd.f32 %v159, %v242
    %v244 = vpop.f32.mrb[0].mxu0
    %v245 = vpop.f32.mrb[0].mxu0
    %v246 = vadd.f32 %v159, %v245
    %v247 = vpop.f32.mrb[0].mxu0
    %248 = vdwg.mxu0
    %v249 = vtanh.pop %v243
    %v250 = vtanh.pop %v246
    %v251 = vpack.c.bf16 %v250, %v249
    %v252 = vlaneseq
    %v253 = vshrl.u32 %v252, 7
    %v254 = vsub.s32 2, %v253
    %v255 = vrot.slane %v97, %v254
    %v272 = vunpack.c.l.b16 %v62
    %v273 = vunpack.c.l.b16 %v63
    %v274 = vunpack.c.l.b16 %v64
    %v275 = vunpack.c.l.b16 %v65
    %v276 = vunpack.c.l.b16 %v66
    %v277 = vunpack.c.l.b16 %v67
    %v278 = vunpack.c.l.b16 %v68
    %v279 = vunpack.c.l.b16 %v69
    %v280 = vunpack.c.l.b16 %v70
    %v281 = vunpack.c.l.b16 %v71
    %v282 = vunpack.c.l.b16 %v72
    %v283 = vunpack.c.l.b16 %v73
    %v284 = vunpack.c.l.b16 %v74
    %v285 = vunpack.c.l.b16 %v75
    %v286 = vunpack.c.l.b16 %v76
    %v287 = vunpack.c.l.b16 %v77
    %v288 = vpack.c.b16 %v273, %v272
    %v289 = vpack.c.b16 %v275, %v274
    %v290 = vpack.c.b16 %v277, %v276
    %v291 = vpack.c.b16 %v279, %v278
    %v292 = vpack.c.b16 %v281, %v280
    %v293 = vpack.c.b16 %v283, %v282
    %v294 = vpack.c.b16 %v285, %v284
    %v295 = vpack.c.b16 %v287, %v286
    %304 = vmatprep.subr.bf16.mxu0 0
    %305 = vmatpush1.bf16.msra.mxu0 %v288
    %306 = vmatprep.subr.bf16.mxu0 0
    %307 = vmatpush1.bf16.msra.mxu0 %v289
    %308 = vmatprep.subr.bf16.mxu0 0
    %309 = vmatpush1.bf16.msra.mxu0 %v290
    %310 = vmatprep.subr.bf16.mxu0 0
    %311 = vmatpush1.bf16.msra.mxu0 %v291
    %312 = vmatprep.subr.bf16.mxu0 0
    %313 = vmatpush1.bf16.msra.mxu0 %v292
    %314 = vmatprep.subr.bf16.mxu0 0
    %315 = vmatpush1.bf16.msra.mxu0 %v293
    %316 = vmatprep.subr.bf16.mxu0 0
    %317 = vmatpush1.bf16.msra.mxu0 %v294
    %318 = vmatprep.subr.bf16.mxu0 0
    %319 = vmatpush1.bf16.msra.mxu0 %v295
    %320 = vmatprep.subr.bf16.mxu0 0
    %321 = vmatpush1.bf16.msra.mxu0 0
    %322 = vmatprep.subr.bf16.mxu0 0
    %323 = vmatpush1.bf16.msra.mxu0 0
    %324 = vmatprep.subr.bf16.mxu0 0
    %325 = vmatpush1.bf16.msra.mxu0 0
    %326 = vmatprep.subr.bf16.mxu0 0
    %327 = vmatpush1.bf16.msra.mxu0 0
    %328 = vmatprep.subr.bf16.mxu0 0
    %329 = vmatpush1.bf16.msra.mxu0 0
    %330 = vmatprep.subr.bf16.mxu0 0
    %331 = vmatpush1.bf16.msra.mxu0 0
    %332 = vmatprep.subr.bf16.mxu0 0
    %333 = vmatpush1.bf16.msra.mxu0 0
    %334 = vmatprep.subr.bf16.mxu0 0
    %335 = vmatpush1.bf16.msra.mxu0 0
    %336 = vmatprep.mubr.bf16.mxu0 0
    %337 = vmatmul.mubr.bf16.gmra.mrb[0].mxu0 %v251
    %v338 = vpop.f32.mrb[0].mxu0
    %v339 = vadd.f32 %v255, %v338
    %v340 = vpop.f32.mrb[0].mxu0
    %v341 = vpop.f32.mrb[0].mxu0
    %v342 = vadd.f32 %v255, %v341
    %v343 = vpop.f32.mrb[0].mxu0
    %344 = vdwg.mxu0
    %v345 = vtanh.pop %v339
    %v346 = vtanh.pop %v342
    %v347 = vpack.c.bf16 %v346, %v345
    %v348 = vlaneseq
    %v349 = vshrl.u32 %v348, 7
    %v350 = vsub.s32 3, %v349
    %v351 = vrot.slane %v97, %v350
    %v368 = vunpack.c.l.b16 %v78
    %v369 = vunpack.c.l.b16 %v79
    %v370 = vunpack.c.l.b16 %v80
    %v371 = vunpack.c.l.b16 %v81
    %v372 = vunpack.c.l.b16 %v82
    %v373 = vunpack.c.l.b16 %v83
    %v374 = vunpack.c.l.b16 %v84
    %v375 = vunpack.c.l.b16 %v85
    %v376 = vunpack.c.l.b16 %v86
    %v377 = vunpack.c.l.b16 %v87
    %v378 = vunpack.c.l.b16 %v88
    %v379 = vunpack.c.l.b16 %v89
    %v380 = vunpack.c.l.b16 %v90
    %v381 = vunpack.c.l.b16 %v91
    %v382 = vunpack.c.l.b16 %v92
    %v383 = vunpack.c.l.b16 %v93
    %v384 = vpack.c.b16 %v369, %v368
    %v385 = vpack.c.b16 %v371, %v370
    %v386 = vpack.c.b16 %v373, %v372
    %v387 = vpack.c.b16 %v375, %v374
    %v388 = vpack.c.b16 %v377, %v376
    %v389 = vpack.c.b16 %v379, %v378
    %v390 = vpack.c.b16 %v381, %v380
    %v391 = vpack.c.b16 %v383, %v382
    %400 = vmatprep.subr.bf16.mxu0 0
    %401 = vmatpush1.bf16.msra.mxu0 %v384
    %402 = vmatprep.subr.bf16.mxu0 0
    %403 = vmatpush1.bf16.msra.mxu0 %v385
    %404 = vmatprep.subr.bf16.mxu0 0
    %405 = vmatpush1.bf16.msra.mxu0 %v386
    %406 = vmatprep.subr.bf16.mxu0 0
    %407 = vmatpush1.bf16.msra.mxu0 %v387
    %408 = vmatprep.subr.bf16.mxu0 0
    %409 = vmatpush1.bf16.msra.mxu0 %v388
    %410 = vmatprep.subr.bf16.mxu0 0
    %411 = vmatpush1.bf16.msra.mxu0 %v389
    %412 = vmatprep.subr.bf16.mxu0 0
    %413 = vmatpush1.bf16.msra.mxu0 %v390
    %414 = vmatprep.subr.bf16.mxu0 0
    %415 = vmatpush1.bf16.msra.mxu0 %v391
    %416 = vmatprep.subr.bf16.mxu0 0
    %417 = vmatpush1.bf16.msra.mxu0 0
    %418 = vmatprep.subr.bf16.mxu0 0
    %419 = vmatpush1.bf16.msra.mxu0 0
    %420 = vmatprep.subr.bf16.mxu0 0
    %421 = vmatpush1.bf16.msra.mxu0 0
    %422 = vmatprep.subr.bf16.mxu0 0
    %423 = vmatpush1.bf16.msra.mxu0 0
    %424 = vmatprep.subr.bf16.mxu0 0
    %425 = vmatpush1.bf16.msra.mxu0 0
    %426 = vmatprep.subr.bf16.mxu0 0
    %427 = vmatpush1.bf16.msra.mxu0 0
    %428 = vmatprep.subr.bf16.mxu0 0
    %429 = vmatpush1.bf16.msra.mxu0 0
    %430 = vmatprep.subr.bf16.mxu0 0
    %431 = vmatpush1.bf16.msra.mxu0 0
    %432 = vmatprep.mubr.bf16.mxu0 0
    %433 = vmatmul.mubr.bf16.gmra.mrb[0].mxu0 %v347
    %v434 = vpop.f32.mrb[0].mxu0
    %v435 = vadd.f32 %v351, %v434
    %v436 = vpop.f32.mrb[0].mxu0
    %v437 = vpop.f32.mrb[0].mxu0
    %v438 = vadd.f32 %v351, %v437
    %v439 = vpop.f32.mrb[0].mxu0
    %440 = vdwg.mxu0
    %v441 = vlaneseq
    %v442 = vand.u32 %v441, 127
    %vm443 = vcmp.eq.s32.totalorder %v442, 7
    %vm444 = vcmp.gt.f32.partialorder %v435, 20.0
    %vm445 = vcmp.gt.f32.partialorder %v438, 20.0
    %v446 = vmin.f32 %v435, 20.0
    %v447 = vmin.f32 %v438, 20.0
    %v448 = vmul.f32 %v446, 1.442695
    %v449 = vpow.pop %v448
    %v450 = vmul.f32 %v447, 1.442695
    %v451 = vpow.pop %v450
    %v452 = vadd.f32 %v449, 1.0
    %v453 = vlog2.pop %v452
    %v454 = vmul.f32 %v453, 0.6931472
    %v455 = vmul.f32 -0.5, %v449
    %v456 = vadd.f32 %v455, 1.0
    %v457 = vmul.f32 %v456, %v449
    %v458 = vand.u32 2147483647, %v449
    %vm459 = vcmp.lt.f32.partialorder %v458, 0.0004427343
    %v460 = vsel %vm459, %v457, %v454
    %v461 = vadd.f32 %v451, 1.0
    %v462 = vlog2.pop %v461
    %v463 = vmul.f32 %v462, 0.6931472
    %v464 = vmul.f32 -0.5, %v451
    %v465 = vadd.f32 %v464, 1.0
    %v466 = vmul.f32 %v465, %v451
    %v467 = vand.u32 2147483647, %v451
    %vm468 = vcmp.lt.f32.partialorder %v467, 0.0004427343
    %v469 = vsel %vm468, %v466, %v463
    %v470 = vsel %vm444, %v435, %v460
    %v471 = vsel %vm445, %v438, %v469
    %v472 = vsel %vm443, %v470, %v435
    %v473 = vsel %vm443, %v471, %v438
    %v474 = vpack.c.bf16 %v473, %v472
    %v476 = vunpack.c.l.b16 %v474
    %v477 = vunpack.c.h.b16 %v474
    %v478 = vpack.c.b16 %v476, %v476
    %v479 = vpack.c.b16 %v477, %v477
    %482 = vst [vmem:[#allocation7] sm:$0xf] %v478
    %483 = vst [vmem:[#allocation7 + $0x4] sm:$0xf] %v479
    // Predicated region
    $region18: #{tpu_custom_call.1} parent=1 // pred_check
      _
    $region19: #{tpu_custom_call.1} parent=1 // pred_check_branch
      %485 = sbr.rel (0) target = $region21
    $region20: #{tpu_custom_call.1} parent=1 // pred_region
      %s487 = ssub.s32 128, 128
      %488 = vsyncadd [#allocation4], %s487
      %s489 = sshll.u32 [#allocation7], 4
      %s490 = int_to_ptr.vmem [resolvable:$true] %s489
      %495 = dma.vmem_to_hbm [thread:$0]  %s490, 128, %s2, [#allocation4], 64, 64, 4
    $region21: #{tpu_custom_call.1} parent=1 // pred_fallthru
      _
    // Predicated region
    $region22: #{tpu_custom_call.1} parent=1 // pred_check
      _
    $region23: #{tpu_custom_call.1} parent=1 // pred_check_branch
      %497 = sbr.rel (0) target = $region25
    $region24: #{tpu_custom_call.1} parent=1 // pred_region
      %498 = dma.done [#allocation4], 128
    $region25: #{tpu_custom_call.1} parent=1 // pred_fallthru
      _
    %499 = vsyncpa [#allocation3], 1
    %500 = vsyncpa [#allocation6], 1
    %501 = vsyncpa [#allocation4], 1

</llo_original>
